<compile_context>
chip_gen: v6e
topology: v6e:2x2x1
jax: 0.10.0
libtpu: 0.0.40
codegen_flags: <defaults>
</compile_context>

<pallas_src>
import functools
import math

import jax
import jax.numpy as jnp
from jax.experimental import pallas as pl
from jax.experimental.pallas import tpu as pltpu

# Finite large-negative mask value (avoids NaN if a row of a tile is fully masked).
_NEG_BIG = -1e30
# MXU operand dtype; accumulation stays f32 everywhere.
_COMPUTE_DTYPE = jnp.bfloat16


def _vmem_limit_bytes() -> int:
    """Scoped VMEM budget: ~half of physical VMEM, capped at 96 MiB.
    v5e/v6e (128 MiB physical) -> 64 MiB; v7x (64 MiB physical) -> 32 MiB."""
    try:
        cap = int(pltpu.get_tpu_info().vmem_capacity_bytes)
        return max(32 << 20, min(96 << 20, cap // 2))
    except Exception:
        return 32 << 20


_VMEM_LIMIT = _vmem_limit_bytes()


def _pick_tile(dim: int, candidates) -> int:
    """Largest candidate tile that evenly divides `dim`, else the full dim."""
    for c in candidates:
        if dim >= c and dim % c == 0:
            return c
    return dim


# ---------------------------------------------------------------------------
# Tiled linear kernel:  out = x @ W + b   (bf16 MXU operands, f32 VMEM accumulator)
# ---------------------------------------------------------------------------
def _matmul_kernel(x_ref, w_ref, b_ref, o_ref, acc_ref):
    k = pl.program_id(2)

    @pl.when(k == 0)
    def _():
        acc_ref[...] = jnp.zeros_like(acc_ref)

    acc_ref[...] += jnp.dot(
        x_ref[...].astype(_COMPUTE_DTYPE),
        w_ref[...].astype(_COMPUTE_DTYPE),
        preferred_element_type=jnp.float32,
    )

    @pl.when(k == pl.num_programs(2) - 1)
    def _():
        o_ref[...] = (acc_ref[...] + b_ref[...].astype(jnp.float32)).astype(o_ref.dtype)


def pallas_linear(x2d, w, b, out_dtype=None):
    """x2d: (M, K) @ w: (K, N) + b: (N,) -> (M, N), tiled + pipelined."""
    M, K = x2d.shape
    Kw, N = w.shape
    assert K == Kw
    out_dtype = out_dtype or x2d.dtype

    # 256/512-multiples preferred (v6e/v7x 256-wide MXU); worst-case f32 working set
    # (double-buffered x/w tiles + f32 acc + double-buffered out) stays well under 28 MiB.
    tm = _pick_tile(M, (512, 256, 128))
    tn = _pick_tile(N, (512, 256, 128))
    tk = _pick_tile(K, (1024, 512, 256, 128))
    grid = (M // tm, N // tn, K // tk)

    b2d = b.reshape(1, N)
    x_isz = jnp.dtype(x2d.dtype).itemsize
    w_isz = jnp.dtype(w.dtype).itemsize
    o_isz = jnp.dtype(out_dtype).itemsize
    cost = pl.CostEstimate(
        flops=2 * M * N * K,
        transcendentals=0,
        bytes_accessed=int(M * K * x_isz * (N // tn)   # x re-read per N tile
                           + K * N * w_isz * (M // tm)  # w re-read per M tile
                           + N * 4 + M * N * o_isz),
    )

    return pl.pallas_call(
        _matmul_kernel,
        out_shape=jax.ShapeDtypeStruct((M, N), out_dtype),
        grid_spec=pltpu.PrefetchScalarGridSpec(
            num_scalar_prefetch=0,
            grid=grid,
            in_specs=[
                pl.BlockSpec((tm, tk), lambda i, j, k: (i, k)),
                pl.BlockSpec((tk, tn), lambda i, j, k: (k, j)),
                pl.BlockSpec((1, tn), lambda i, j, k: (0, j)),
            ],
            out_specs=pl.BlockSpec((tm, tn), lambda i, j, k: (i, j)),
            scratch_shapes=[pltpu.VMEM((tm, tn), jnp.float32)],
        ),
        compiler_params=pltpu.CompilerParams(
            dimension_semantics=("parallel", "parallel", "arbitrary"),
            vmem_limit_bytes=_VMEM_LIMIT,
        ),
        cost_estimate=cost,
    )(x2d, w, b2d)


# ---------------------------------------------------------------------------
# Flash-attention kernel (online softmax, all heads per step, in-kernel head merge)
# ---------------------------------------------------------------------------
def _flash_attn_kernel(q_ref, k_ref, v_ref, o_ref, m_sc, l_sc, acc_sc, *,
                       scale, causal, tq, tk, n_head, head_dim):
    qi = pl.program_id(1)
    ki = pl.program_id(2)

    @pl.when(ki == 0)
    def _():
        m_sc[...] = jnp.full_like(m_sc, -jnp.inf)
        l_sc[...] = jnp.zeros_like(l_sc)
        acc_sc[...] = jnp.zeros_like(acc_sc)

    q_start = qi * tq
    k_start = ki * tk

    def _tile(masked):
        # Fold softmax scale into the (H, tq, D) q tile (tk/D x fewer VPU multiplies
        # than scaling the score matrix; stays hidden under the MXU).
        q = q_ref[...] * scale                      # bf16
        k = k_ref[...]                              # bf16
        # Batched per-head QK^T, contracting head_dim of both operands (no K transpose).
        s = jnp.einsum("hqd,hkd->hqk", q, k,
                       preferred_element_type=jnp.float32)   # (H, tq, tk) f32

        if masked:
            # Only diagonal-straddling tiles pay for the mask math.
            row = jax.lax.broadcasted_iota(jnp.int32, (tq, tk), 0) + q_start
            col = jax.lax.broadcasted_iota(jnp.int32, (tq, tk), 1) + k_start
            # Finite mask value; safe because the first visited tile (ki=0) always has
            # column 0 visible for every row (causal SELF-attention invariant).
            # TODO(synk): guard this if the kernel is reused for cross/padded KV.
            s = jnp.where((col <= row)[None, :, :], s, _NEG_BIG)

        m_prev = m_sc[...]
        m_new = jnp.maximum(m_prev, jnp.max(s, axis=-1, keepdims=True))
        alpha = jnp.exp(m_prev - m_new)
        p = jnp.exp(s - m_new)
        l_sc[...] = alpha * l_sc[...] + jnp.sum(p, axis=-1, keepdims=True)
        acc_sc[...] = alpha * acc_sc[...] + jnp.einsum(
            "hqk,hkd->hqd", p.astype(v_ref.dtype), v_ref[...],
            preferred_element_type=jnp.float32,
        )
        m_sc[...] = m_new

    if causal:
        fully_visible = (k_start + (tk - 1)) <= q_start
        straddles = jnp.logical_and(k_start <= q_start + (tq - 1),
                                    (k_start + (tk - 1)) > q_start)
        pl.when(fully_visible)(lambda: _tile(False))   # no mask math
        pl.when(straddles)(lambda: _tile(True))        # mask math only here
        # Tiles entirely above the diagonal: no compute, and (via the clamped KV
        # index_map) no DMA either.
    else:
        _tile(False)

    @pl.when(ki == pl.num_programs(2) - 1)
    def _():
        inv_l = pl.reciprocal(l_sc[...], approx=True)   # EUP slot, off the VPU
        out = (acc_sc[...] * inv_l).astype(o_ref.dtype)  # (H, tq, D)
        # Merge heads in-kernel: head h -> columns [h*D, (h+1)*D) of the (tq, C) block.
        for h in range(n_head):                          # static unroll, static lane slices
            o_ref[:, h * head_dim:(h + 1) * head_dim] = out[h]


def pallas_flash_attention(q, k, v, causal=True, out_dtype=None):
    """q, k, v: (B, H, T, D) -> (B, T, H*D); heads merged inside the kernel."""
    B, H, T, D = q.shape
    out_dtype = out_dtype or q.dtype
    tq = _pick_tile(T, (256, 128))
    tk = _pick_tile(T, (256, 128))
    scale = 1.0 / math.sqrt(D)

    kern = functools.partial(_flash_attn_kernel, scale=scale, causal=causal,
                             tq=tq, tk=tk, n_head=H, head_dim=D)

    def q_map(b, qi, ki):
        return (b, 0, qi, 0)

    if causal:
        def kv_map(b, qi, ki):
            # Clamp to the last KV block with any visible column: fully-masked tiles
            # alias the resident buffer, so they are never fetched from HBM.
            last_needed = (qi * tq + (tq - 1)) // tk
            return (b, 0, jnp.minimum(ki, last_needed), 0)
    else:
        def kv_map(b, qi, ki):
            return (b, 0, ki, 0)

    q_spec = pl.BlockSpec((None, H, tq, D), q_map)
    kv_spec = pl.BlockSpec((None, H, tk, D), kv_map)
    o_spec = pl.BlockSpec((None, tq, H * D), lambda b, qi, ki: (b, qi, 0))

    isz = jnp.dtype(q.dtype).itemsize
    o_isz = jnp.dtype(out_dtype).itemsize
    n_q = max(1, T // tq)
    causal_frac = 0.5 * (1.0 + 1.0 / n_q) if causal else 1.0
    kv_passes = max(1, int(round(n_q * causal_frac)))   # K/V re-streamed per Q tile
    cost = pl.CostEstimate(
        flops=int(4 * B * H * T * T * D * causal_frac),
        transcendentals=int(B * H * T * T * causal_frac),
        bytes_accessed=int(B * H * T * D * isz
                           + 2 * B * H * T * D * isz * kv_passes
                           + B * T * H * D * o_isz),
    )

    return pl.pallas_call(
        kern,
        out_shape=jax.ShapeDtypeStruct((B, T, H * D), out_dtype),
        grid_spec=pltpu.PrefetchScalarGridSpec(
            num_scalar_prefetch=0,
            grid=(B, T // tq, T // tk),
            in_specs=[q_spec, kv_spec, kv_spec],
            out_specs=o_spec,
            scratch_shapes=[
                pltpu.VMEM((H, tq, 1), jnp.float32),   # running max
                pltpu.VMEM((H, tq, 1), jnp.float32),   # running sum
                pltpu.VMEM((H, tq, D), jnp.float32),   # output accumulator
            ],
        ),
        compiler_params=pltpu.CompilerParams(
            dimension_semantics=("parallel", "parallel", "arbitrary"),
            vmem_limit_bytes=_VMEM_LIMIT,
        ),
        cost_estimate=cost,
    )(q, k, v)


# ---------------------------------------------------------------------------
# MultiHeadAttention forward (causal self-attention, dropout=0 -> identity)
# ---------------------------------------------------------------------------
def multi_head_attention(x, params, n_head, causal=True):
    B, T, C = x.shape
    hd = C // n_head
    x2d = x.reshape(B * T, C)

    # Fused QKV projection (one pass over x); weights cast to bf16 once (halves weight DMA).
    w_qkv = jnp.concatenate(
        [params["wq_w"], params["wk_w"], params["wv_w"]], axis=1
    ).astype(_COMPUTE_DTYPE)
    b_qkv = jnp.concatenate([params["wq_b"], params["wk_b"], params["wv_b"]], axis=0)
    qkv = pallas_linear(x2d, w_qkv, b_qkv, out_dtype=_COMPUTE_DTYPE)   # (B*T, 3C) bf16

    # TODO(synk): the Q/K/V head split below is still an XLA transpose (one HBM pass in
    # bf16); a direct column-block read from the fused qkv is not expressible under the
    # (8,128) BlockSpec constraint when head_dim < 128.
    qkv = qkv.reshape(B, T, 3, n_head, hd)
    q = qkv[:, :, 0].transpose(0, 2, 1, 3)                 # (B, H, T, hd) bf16
    k = qkv[:, :, 1].transpose(0, 2, 1, 3)
    v = qkv[:, :, 2].transpose(0, 2, 1, 3)

    # Heads are merged inside the kernel -> output is already (B, T, C); no merge
    # transpose / extra HBM pass before the output projection.
    y = pallas_flash_attention(q, k, v, causal=causal, out_dtype=_COMPUTE_DTYPE)
    y2d = y.reshape(B * T, C)

    out = pallas_linear(y2d, params["proj_w"].astype(_COMPUTE_DTYPE),
                        params["proj_b"], out_dtype=x.dtype)
    # attn_dropout / resid_dropout are identity since dropout=0.0.
    return out.reshape(B, T, C)


# ---------------------------------------------------------------------------
# Pure-JAX reference (mirrors the PyTorch forward) for verification
# ---------------------------------------------------------------------------
def reference_mha(x, params, n_head):
    B, T, C = x.shape
    hd = C // n_head
    q = x @ params["wq_w"] + params["wq_b"]
    k = x @ params["wk_w"] + params["wk_b"]
    v = x @ params["wv_w"] + params["wv_b"]
    q = q.reshape(B, T, n_head, hd).transpose(0, 2, 1, 3)
    k = k.reshape(B, T, n_head, hd).transpose(0, 2, 1, 3)
    v = v.reshape(B, T, n_head, hd).transpose(0, 2, 1, 3)
    att = (q @ jnp.swapaxes(k, -2, -1)) * (1.0 / math.sqrt(hd))
    mask = jnp.tril(jnp.ones((T, T), dtype=bool))
    att = jnp.where(mask[None, None], att, -jnp.inf)
    att = jax.nn.softmax(att, axis=-1)
    y = att @ v
    y = y.transpose(0, 2, 1, 3).reshape(B, T, C)
    return y @ params["proj_w"] + params["proj_b"]


if __name__ == "__main__":
    # Small shapes consistent with the module: B=2, T=8, n_embd=32, n_head=8.
    B, T, C, H = 2, 8, 32, 8

    key = jax.random.PRNGKey(0)
    keys = jax.random.split(key, 9)
    bound = 1.0 / math.sqrt(C)  # nn.Linear-style scale, deterministic init

    params = {
        "wq_w": jax.random.uniform(keys[0], (C, C), jnp.float32, -bound, bound),
        "wq_b": jax.random.uniform(keys[1], (C,), jnp.float32, -bound, bound),
        "wk_w": jax.random.uniform(keys[2], (C, C), jnp.float32, -bound, bound),
        "wk_b": jax.random.uniform(keys[3], (C,), jnp.float32, -bound, bound),
        "wv_w": jax.random.uniform(keys[4], (C, C), jnp.float32, -bound, bound),
        "wv_b": jax.random.uniform(keys[5], (C,), jnp.float32, -bound, bound),
        "proj_w": jax.random.uniform(keys[6], (C, C), jnp.float32, -bound, bound),
        "proj_b": jax.random.uniform(keys[7], (C,), jnp.float32, -bound, bound),
    }
    x = jax.random.normal(keys[8], (B, T, C), jnp.float32)

    y = multi_head_attention(x, params, H)
    y = jax.block_until_ready(y)

    y_ref = reference_mha(x, params, H)
    assert y.shape == (B, T, C)
    # Tolerance accounts for bf16 MXU operands / bf16 intermediates and the approximate
    # EUP reciprocal in the flash epilogue (f32 reference).
    assert jnp.allclose(y, y_ref, atol=5e-2, rtol=5e-2), "mismatch vs reference"

    print("KERNEL_OK")
</pallas_src>

<mosaic_0001>
module attributes {stable_mosaic.version = 11 : i64} {
  func.func @_matmul_kernel(%arg0: i32, %arg1: i32, %arg2: i32, %arg3: memref<16x32xf32, #tpu.memory_space<vmem>>, %arg4: memref<32x96xbf16, #tpu.memory_space<vmem>>, %arg5: memref<1x96xf32, #tpu.memory_space<vmem>>, %arg6: memref<16x96xbf16, #tpu.memory_space<vmem>>, %arg7: memref<16x96xf32, #tpu.memory_space<vmem>>) attributes {dimension_semantics = [#tpu.dimension_semantics<parallel>, #tpu.dimension_semantics<parallel>, #tpu.dimension_semantics<arbitrary>], iteration_bounds = array<i64: 1, 1, 1>, scalar_prefetch = 0 : i64, scratch_operands = 1 : i64, tpu.core_type = #tpu.core_type<tc>, window_params = [{transform_indices = @transform_0, window_bounds = array<i64: 16, 32>}, {transform_indices = @transform_1, window_bounds = array<i64: 32, 96>}, {transform_indices = @transform_2, window_bounds = array<i64: 1, 96>}, {transform_indices = @transform_3, window_bounds = array<i64: 16, 96>}]} {
    %c0_i32 = arith.constant 0 : i32
    %0 = arith.cmpi eq, %arg2, %c0_i32 : i32
    %1 = arith.extui %0 : i1 to i32
    %c0_i32_0 = arith.constant 0 : i32
    %2 = arith.cmpi ne, %1, %c0_i32_0 : i32
    scf.if %2 {
      %cst_10 = arith.constant 0.000000e+00 : f32
      %13 = vector.broadcast %cst_10 : f32 to vector<16x96xf32>
      %c0_11 = arith.constant 0 : index
      %c0_12 = arith.constant 0 : index
      %14 = vector.load %arg7[%c0_11, %c0_12] : memref<16x96xf32, #tpu.memory_space<vmem>>, vector<16x96xf32>
      tpu.vector_store %arg7[%c0_11, %c0_12], %13 {strides = array<i32>} : memref<16x96xf32, #tpu.memory_space<vmem>>, vector<16x96xf32>,
    } else {
    }
    %c0 = arith.constant 0 : index
    %c0_1 = arith.constant 0 : index
    %3 = vector.load %arg7[%c0, %c0_1] : memref<16x96xf32, #tpu.memory_space<vmem>>, vector<16x96xf32>
    %c0_2 = arith.constant 0 : index
    %c0_3 = arith.constant 0 : index
    %4 = vector.load %arg3[%c0_2, %c0_3] : memref<16x32xf32, #tpu.memory_space<vmem>>, vector<16x32xf32>
    %5 = arith.truncf %4 : vector<16x32xf32> to vector<16x32xbf16>
    %c0_4 = arith.constant 0 : index
    %c0_5 = arith.constant 0 : index
    %6 = vector.load %arg4[%c0_4, %c0_5] : memref<32x96xbf16, #tpu.memory_space<vmem>>, vector<32x96xbf16>
    %cst = arith.constant dense<0.000000e+00> : vector<16x96xf32>
    %7 = tpu.matmul %5, %6, %cst {dimension_numbers = #tpu.dot_dimension_numbers<[1], [0], [0], [1], [0, 0, 1, 1], [], []>} : vector<16x32xbf16>, vector<32x96xbf16>, vector<16x96xf32> -> vector<16x96xf32>
    %8 = arith.addf %3, %7 : vector<16x96xf32>
    %c0_6 = arith.constant 0 : index
    %c0_7 = arith.constant 0 : index
    %9 = vector.load %arg7[%c0_6, %c0_7] : memref<16x96xf32, #tpu.memory_space<vmem>>, vector<16x96xf32>
    tpu.vector_store %arg7[%c0_6, %c0_7], %8 {strides = array<i32>} : memref<16x96xf32, #tpu.memory_space<vmem>>, vector<16x96xf32>,
    %c0_i32_8 = arith.constant 0 : i32
    %10 = arith.cmpi eq, %arg2, %c0_i32_8 : i32
    %11 = arith.extui %10 : i1 to i32
    %c0_i32_9 = arith.constant 0 : i32
    %12 = arith.cmpi ne, %11, %c0_i32_9 : i32
    scf.if %12 {
      %c0_10 = arith.constant 0 : index
      %c0_11 = arith.constant 0 : index
      %13 = vector.load %arg7[%c0_10, %c0_11] : memref<16x96xf32, #tpu.memory_space<vmem>>, vector<16x96xf32>
      %c0_12 = arith.constant 0 : index
      %c0_13 = arith.constant 0 : index
      %14 = vector.load %arg5[%c0_12, %c0_13] : memref<1x96xf32, #tpu.memory_space<vmem>>, vector<1x96xf32>
      %15 = vector.broadcast %14 : vector<1x96xf32> to vector<16x96xf32>
      %16 = arith.addf %13, %15 : vector<16x96xf32>
      %17 = arith.truncf %16 : vector<16x96xf32> to vector<16x96xbf16>
      %c0_14 = arith.constant 0 : index
      %c0_15 = arith.constant 0 : index
      %18 = vector.load %arg6[%c0_14, %c0_15] : memref<16x96xbf16, #tpu.memory_space<vmem>>, vector<16x96xbf16>
      tpu.vector_store %arg6[%c0_14, %c0_15], %17 {strides = array<i32>} : memref<16x96xbf16, #tpu.memory_space<vmem>>, vector<16x96xbf16>,
    } else {
    }
    return
  }
  func.func @transform_0(%arg0: i32, %arg1: i32, %arg2: i32) -> (i32, i32) {
    %c0_i32 = arith.constant 0 : i32
    return %arg0, %arg2 : i32, i32
  }
  func.func @transform_1(%arg0: i32, %arg1: i32, %arg2: i32) -> (i32, i32) {
    %c0_i32 = arith.constant 0 : i32
    return %arg2, %arg1 : i32, i32
  }
  func.func @transform_2(%arg0: i32, %arg1: i32, %arg2: i32) -> (i32, i32) {
    %c0_i32 = arith.constant 0 : i32
    %c0_i32_0 = arith.constant 0 : i32
    return %c0_i32, %arg1 : i32, i32
  }
  func.func @transform_3(%arg0: i32, %arg1: i32, %arg2: i32) -> (i32, i32) {
    %c0_i32 = arith.constant 0 : i32
    return %arg0, %arg1 : i32, i32
  }
}

</mosaic_0001>

<llo_original>
// kernel: tpu_custom_call.1
$region0: #{tpu_custom_call.1}
  #allocation0 [shape = 'u32[]', space=smem, size = 0x4, offset = 0x4, fixed_abs, tag = 'smem constant byte address 0x4 - core index']
  #allocation1 [shape = 'u32[144,128]{1,0:T(1,128)}', space=vmem, size = 0x12000, scoped, tag = 'internal scratch']
  #allocation2 [shape = 'f32[16,96]{1,0:T(8,128)}', space=vmem, size = 0x2000, scoped, tag = 'scratch operand']
  %s0 = inlined_call_operand.hbm [shape: f32[16,32], index: 0, kind: input, shape index: {}]
  %s1 = inlined_call_operand.hbm [shape: bf16[32,96], index: 1, kind: input, shape index: {}]
  %s2 = inlined_call_operand.vmem [shape: f32[1,96], index: 2, kind: input, shape index: {}]
  %s3 = inlined_call_operand.hbm [shape: bf16[16,96], index: 3, kind: output, shape index: {}]
  %s4 = sld [smem:[#allocation0]]
  $region38: #{tpu_custom_call.1} parent=0
    _
  %s6 = ssub.s32 1, %s4
  %s7 = scalar_select 0, %s6, %s4
  $region1: #{tpu_custom_call.1} parent=0
    #allocation3 [shape = 'u8[8192]{0}', space=vmem, size = 0x2000, scoped, tag = 'input window, operand 0, single buffered']
    #allocation4 [shape = 's32[1]{0}', space=sflag, size = 0x4, scoped, tag = 'scoped memory for tpu_custom_call.1']
    #allocation5 [shape = 's32[1]{0}', space=sflag, size = 0x4, scoped, tag = 'scoped memory for tpu_custom_call.1']
    #allocation6 [shape = 'u8[8192]{0}', space=vmem, size = 0x2000, scoped, tag = 'input window, operand 1, single buffered']
    #allocation7 [shape = 's32[1]{0}', space=sflag, size = 0x4, scoped, tag = 'scoped memory for tpu_custom_call.1']
    #allocation8 [shape = 'u8[4096]{0}', space=vmem, size = 0x1000, scoped, tag = 'output window, operand 0, single buffered']
    %8 = vsyncpa [#allocation4], 0
    %9 = vsyncpa [#allocation7], 0
    %10 = vsyncpa [#allocation5], 0
    // Predicated region
    $region2: #{tpu_custom_call.1} parent=1 // pred_check
      _
    $region3: #{tpu_custom_call.1} parent=1 // pred_check_branch
      %12 = sbr.rel (0) target = $region5
    $region4: #{tpu_custom_call.1} parent=1 // pred_region
      %s14 = ssub.s32 256, 256
      %15 = vsyncadd [#allocation4], %s14
      %s16 = sshll.u32 [#allocation3], 4
      %s17 = int_to_ptr.vmem [resolvable:$true] %s16
      %22 = dma.hbm_to_vmem [thread:$0]  %s0, 256, %s17, [#allocation4], 128, 128, 8
    $region5: #{tpu_custom_call.1} parent=1 // pred_fallthru
      _
    // Predicated region
    $region6: #{tpu_custom_call.1} parent=1 // pred_check
      _
    $region7: #{tpu_custom_call.1} parent=1 // pred_check_branch
      %24 = sbr.rel (0) target = $region9
    $region8: #{tpu_custom_call.1} parent=1 // pred_region
      %s26 = ssub.s32 256, 256
      %27 = vsyncadd [#allocation7], %s26
      %s28 = sshll.u32 [#allocation6], 4
      %s29 = int_to_ptr.vmem [resolvable:$true] %s28
      %34 = dma.hbm_to_vmem [thread:$0]  %s1, 256, %s29, [#allocation7], 64, 64, 4
    $region9: #{tpu_custom_call.1} parent=1 // pred_fallthru
      _
    // Predicated region
    $region10: #{tpu_custom_call.1} parent=1 // pred_check
      _
    $region11: #{tpu_custom_call.1} parent=1 // pred_check_branch
      %36 = sbr.rel (0) target = $region13
    $region12: #{tpu_custom_call.1} parent=1 // pred_region
      _
    $region13: #{tpu_custom_call.1} parent=1 // pred_fallthru
      _
    // Predicated region
    $region14: #{tpu_custom_call.1} parent=1 // pred_check
      _
    $region15: #{tpu_custom_call.1} parent=1 // pred_check_branch
      %38 = sbr.rel (0) target = $region17
    $region16: #{tpu_custom_call.1} parent=1 // pred_region
      %39 = dma.done [#allocation4], 256
    $region17: #{tpu_custom_call.1} parent=1 // pred_fallthru
      _
    // Predicated region
    $region18: #{tpu_custom_call.1} parent=1 // pred_check
      _
    $region19: #{tpu_custom_call.1} parent=1 // pred_check_branch
      %41 = sbr.rel (0) target = $region21
    $region20: #{tpu_custom_call.1} parent=1 // pred_region
      %42 = dma.done [#allocation7], 256
    $region21: #{tpu_custom_call.1} parent=1 // pred_fallthru
      _
    %p44 = scmp.eq.s32.totalorder 0, 0
    // Predicated region
    $region22: #{tpu_custom_call.1} parent=1 // pred_check
      %p45 = pneg %p44
    $region23: #{tpu_custom_call.1} parent=1 // pred_check_branch
      %47 = sbr.rel (%p45) target = $region25
    $region24: #{tpu_custom_call.1} parent=1 // pred_region
      %vm48 = vcmask 785408
      %49 = vst.msk [vmem:[#allocation2] sm:$0xff] %vm48, 0.0
      %50 = vst.msk [vmem:[#allocation2 + $0x8] sm:$0xff] %vm48, 0.0
    $region25: #{tpu_custom_call.1} parent=1 // pred_fallthru
      _
    %v51 = vld [vmem:[#allocation2] sm:$0xff]
    %v52 = vld [vmem:[#allocation2 + $0x8] sm:$0xff]
    %v53 = vld [vmem:[#allocation3] sm:$0xff]
    %v54 = vld [vmem:[#allocation3 + $0x8] sm:$0xff]
    %v55 = vpack.c.bf16 %v54, %v53
    %v56 = vld [vmem:[#allocation6] sm:$0xf]
    %v57 = vld [vmem:[#allocation6 + $0x4] sm:$0xf]
    %v58 = vld [vmem:[#allocation6 + $0x8] sm:$0xf]
    %v59 = vld [vmem:[#allocation6 + $0xc] sm:$0xf]
    %v64 = vunpack.c.l.b16 %v56
    %v65 = vunpack.c.l.b16 %v57
    %v66 = vunpack.c.l.b16 %v58
    %v67 = vunpack.c.l.b16 %v59
    %v68 = vpack.c.b16 %v65, %v64
    %v69 = vpack.c.b16 %v67, %v66
    %vm72 = vcmask 261120
    %v74 = vsel %vm72, %v55, 0
    %76 = vmatprep.subr.bf16.mxu0 0
    %77 = vmatpush1.bf16.msra.mxu0 0
    %78 = vmatprep.subr.bf16.mxu0 0
    %79 = vmatpush1.bf16.msra.mxu0 0
    %80 = vmatprep.subr.bf16.mxu0 0
    %81 = vmatpush1.bf16.msra.mxu0 0
    %82 = vmatprep.subr.bf16.mxu0 0
    %83 = vmatpush1.bf16.msra.mxu0 0
    %84 = vmatprep.subr.bf16.mxu0 0
    %85 = vmatpush1.bf16.msra.mxu0 0
    %86 = vmatprep.subr.bf16.mxu0 0
    %87 = vmatpush1.bf16.msra.mxu0 0
    %88 = vmatprep.subr.bf16.mxu0 0
    %89 = vmatpush1.bf16.msra.mxu0 %v69
    %90 = vmatprep.subr.bf16.mxu0 0
    %91 = vmatpush1.bf16.msra.mxu0 %v68
    %92 = vmatprep.subr.bf16.mxu0 0
    %93 = vmatpush2.bf16.msra.mxu0 0
    %94 = vmatprep.subr.bf16.mxu0 0
    %95 = vmatpush2.bf16.msra.mxu0 0
    %96 = vmatprep.subr.bf16.mxu0 0
    %97 = vmatpush2.bf16.msra.mxu0 0
    %98 = vmatprep.subr.bf16.mxu0 0
    %99 = vmatpush2.bf16.msra.mxu0 0
    %100 = vmatprep.subr.bf16.mxu0 0
    %101 = vmatpush2.bf16.msra.mxu0 0
    %102 = vmatprep.subr.bf16.mxu0 0
    %103 = vmatpush2.bf16.msra.mxu0 0
    %104 = vmatprep.subr.bf16.mxu0 0
    %105 = vmatpush2.bf16.msra.mxu0 0
    %106 = vmatprep.subr.bf16.mxu0 0
    %107 = vmatpush2.bf16.msra.mxu0 0
    %108 = vmatprep.mubr.bf16.mxu0 0
    %109 = vmatmul.mubr.bf16.gmra.mxu0 %v74
    %v110 = vpop.f32.mrf.mxu0
    %v111 = vadd.f32 0.0, %v110
    %v112 = vpop.f32.mrf.mxu0
    %v113 = vpop.f32.mrf.mxu0
    %v114 = vadd.f32 0.0, %v113
    %v115 = vpop.f32.mrf.mxu0
    %116 = vdwg.mxu0
    %v117 = vadd.f32 %v51, %v111
    %v118 = vadd.f32 %v52, %v114
    %vm119 = vcmask 785408
    %120 = vst.msk [vmem:[#allocation2] sm:$0xff] %vm119, %v117
    %121 = vst.msk [vmem:[#allocation2 + $0x8] sm:$0xff] %vm119, %v118
    // Predicated region
    $region26: #{tpu_custom_call.1} parent=1 // pred_check
      %p122 = pneg %p44
    $region27: #{tpu_custom_call.1} parent=1 // pred_check_branch
      %124 = sbr.rel (%p122) target = $region29
    $region28: #{tpu_custom_call.1} parent=1 // pred_region
      %v125 = vld [vmem:[#allocation2] sm:$0xff]
      %v126 = vld [vmem:[#allocation2 + $0x8] sm:$0xff]
      %v127 = vld [vmem:[%s2] sm:$0x1]
      %v129 = vlaneseq
      %v130 = vshrl.u32 %v129, 7
      %v131 = vsub.s32 0, %v130
      %v132 = vrot.slane %v127, %v131
      %v134 = vadd.f32 %v125, %v132
      %v135 = vadd.f32 %v126, %v132
      %v136 = vpack.c.bf16 %v135, %v134
      %v138 = vunpack.c.l.b16 %v136
      %v139 = vunpack.c.h.b16 %v136
      %v140 = vpack.c.b16 %v138, %v138
      %v141 = vpack.c.b16 %v139, %v139
      %vm144 = vcmask 781312
      %145 = vst.msk [vmem:[#allocation8] sm:$0xf] %vm144, %v140
      %146 = vst.msk [vmem:[#allocation8 + $0x4] sm:$0xf] %vm144, %v141
    $region29: #{tpu_custom_call.1} parent=1 // pred_fallthru
      _
    // Predicated region
    $region30: #{tpu_custom_call.1} parent=1 // pred_check
      _
    $region31: #{tpu_custom_call.1} parent=1 // pred_check_branch
      %148 = sbr.rel (0) target = $region33
    $region32: #{tpu_custom_call.1} parent=1 // pred_region
      %s150 = ssub.s32 128, 128
      %151 = vsyncadd [#allocation5], %s150
      %s152 = sshll.u32 [#allocation8], 4
      %s153 = int_to_ptr.vmem [resolvable:$true] %s152
      %158 = dma.vmem_to_hbm [thread:$0]  %s153, 128, %s3, [#allocation5], 64, 64, 4
    $region33: #{tpu_custom_call.1} parent=1 // pred_fallthru
      _
    // Predicated region
    $region34: #{tpu_custom_call.1} parent=1 // pred_check
      _
    $region35: #{tpu_custom_call.1} parent=1 // pred_check_branch
      %160 = sbr.rel (0) target = $region37
    $region36: #{tpu_custom_call.1} parent=1 // pred_region
      %161 = dma.done [#allocation5], 128
    $region37: #{tpu_custom_call.1} parent=1 // pred_fallthru
      _
    %162 = vsyncpa [#allocation4], 1
    %163 = vsyncpa [#allocation7], 1
    %164 = vsyncpa [#allocation5], 1

</llo_original>
